<compile_context>
chip_gen: v6e
topology: v6e:2x2x1
jax: 0.10.0
libtpu: 0.0.40
codegen_flags: <defaults>
</compile_context>

<pallas_src>
import functools

import jax
import jax.numpy as jnp
from jax.experimental import pallas as pl
from jax.experimental.pallas import tpu as pltpu


def lstm_kernel(x_ref, wx_ref, b_ref, wh_ref, wph_ref, bp_ref, h0_ref, c0_ref,
                out_ref):
    # x_ref  : (S, B, 1)  input sequence (input_dim == 1), f32
    # wx_ref : (1, 4H)    packed per-gate input weights [g, i, f, o], f32
    # b_ref  : (1, 4H)    packed per-gate biases, f32
    # wh_ref : (H, 4H)    packed recurrent weights, bf16 (MXU operand)
    # wph_ref: (H, C)     output projection, bf16 (MXU operand)
    # bp_ref : (1, C)     output bias, f32
    # h0_ref : (B, H), c0_ref: (B, H)  initial state, f32
    # out_ref: (B, C)
    S = x_ref.shape[0]
    H = wh_ref.shape[0]

    # Loop-invariant loads hoisted out of the recurrence.
    wx = wx_ref[...]                                   # (1, 4H) f32
    b4 = b_ref[...]                                    # (1, 4H) f32
    wh = wh_ref[...]                                   # (H, 4H) bf16
    h0 = h0_ref[...]                                   # (B, H)  f32
    c0 = c0_ref[...]                                   # (B, H)  f32

    def step(t, carry):
        h, c = carry                                   # (B, H) f32 each
        # Input projection folded into the step: 2 VPU ops, hidden under the
        # MXU latency of the recurrent matmul (no big VMEM scratch needed).
        xw = x_ref[t] * wx + b4                        # (B,1)*(1,4H)+(1,4H) -> (B,4H)
        # bf16 MXU operands, f32 accumulate; one output lane group per step.
        pre = xw + jnp.dot(h.astype(jnp.bfloat16), wh,
                           preferred_element_type=jnp.float32)   # (B, 4H) f32
        # One tanh pass + one sigmoid pass over the full 128-lane gate group
        # (instead of 4 separate per-gate transcendental passes).
        t_all = jnp.tanh(pre)
        s_all = jax.nn.sigmoid(pre)
        # Static 32-lane slices select each gate's slot; the compiler handles
        # the lane alignment on the XLU slot (off the MXU/VALU critical path).
        g_t = t_all[:, 0 * H:1 * H]
        i_t = s_all[:, 1 * H:2 * H]
        f_t = s_all[:, 2 * H:3 * H]
        o_t = s_all[:, 3 * H:4 * H]
        c_new = g_t * i_t + c * f_t                    # f32 VPU
        h_new = jnp.tanh(c_new) * o_t                  # f32 EUP + VPU
        return (h_new, c_new)

    # Static small trip count: unroll so the LLO scheduler sees the whole chain
    # and can overlap step t+1's MXU push with step t's EUP tail.
    h_final, _ = jax.lax.fori_loop(0, S, step, (h0, c0), unroll=True)

    out = (jnp.dot(h_final.astype(jnp.bfloat16), wph_ref[...],
                   preferred_element_type=jnp.float32)
           + bp_ref[...])                              # (B, C) f32
    out_ref[...] = out.astype(out_ref.dtype)


def pack_params(params):
    """One-time packing of the PyTorch-style parameters into lane-dense blocks.

    The four gates share a single 128-lane group (H=32 lanes per gate):
      lanes [0:H)=g, [H:2H)=i, [2H:3H)=f, [3H:4H)=o.
    MXU operands (recurrent and projection weights) are pre-cast to bf16.
    """
    H = params["W_gh"].shape[0]
    B = params["c_init"].shape[1]
    assert params["W_gx"].shape[1] == 1, "module semantics require input_dim == 1"

    gates = ("g", "i", "f", "o")
    wh = jnp.concatenate([params[f"W_{k}h"].T for k in gates], axis=1)      # (H, 4H)
    wx = jnp.concatenate([params[f"W_{k}x"][:, 0][None, :] for k in gates],
                         axis=1)                                            # (1, 4H)
    b4 = jnp.concatenate([params[f"b_{k}"][:, 0][None, :] for k in gates],
                         axis=1)                                            # (1, 4H)
    wph = params["W_ph"].T                                                  # (H, C)
    bp = params["b_p"][:, 0][None, :]                                       # (1, C)

    # Broadcasting h_init along batch BEFORE the matmul is equivalent (by
    # linearity) to the PyTorch broadcast that happens after W_gh @ h_init.
    h0 = jnp.broadcast_to(params["h_init"].T, (B, H)).astype(jnp.float32)   # (B, H)
    c0 = params["c_init"].T.astype(jnp.float32)                             # (B, H)

    return {
        "wx": wx.astype(jnp.float32),
        "b4": b4.astype(jnp.float32),
        "wh": wh.astype(jnp.bfloat16),     # MXU operand (f32 accumulate in-kernel)
        "wph": wph.astype(jnp.bfloat16),   # MXU operand
        "bp": bp.astype(jnp.float32),
        "h0": h0,
        "c0": c0,
    }


@jax.jit
def lstm_forward(x, packed):
    """x: (batch, seq) float32.  Returns (batch, num_classes) float32."""
    B, S = x.shape
    C = packed["wph"].shape[1]

    x_sb = x.T[:, :, None]                 # (S, B, 1), layout plumbing only

    vmem = pl.BlockSpec(memory_space=pltpu.MemorySpace.VMEM)
    out = pl.pallas_call(
        lstm_kernel,
        out_shape=jax.ShapeDtypeStruct((B, C), jnp.float32),
        in_specs=[vmem] * 8,
        out_specs=vmem,
    )(x_sb, packed["wx"], packed["b4"], packed["wh"],
      packed["wph"], packed["bp"], packed["h0"], packed["c0"])
    return out                             # (B, C) == torch.t(p_t)


def lstm_reference(x, p, mxu_dtype=jnp.float32):
    """Pure-JAX transcription of the PyTorch forward.

    mxu_dtype=float32  -> exact PyTorch semantics.
    mxu_dtype=bfloat16 -> mirrors the kernel's bf16-operand / f32-accumulate
                          MXU numerics (tight correctness check of the packing,
                          gate order and recurrence structure).
    """
    def mm(a, b):
        return jnp.dot(a.astype(mxu_dtype), b.astype(mxu_dtype),
                       preferred_element_type=jnp.float32)

    B = x.shape[0]
    h = jnp.broadcast_to(p["h_init"], (p["h_init"].shape[0], B))
    c = p["c_init"]
    for t in range(x.shape[1]):
        x_t = x[:, t][None, :]
        g = jnp.tanh(p["W_gx"] @ x_t + mm(p["W_gh"], h) + p["b_g"])
        i = jax.nn.sigmoid(p["W_ix"] @ x_t + mm(p["W_ih"], h) + p["b_i"])
        f = jax.nn.sigmoid(p["W_fx"] @ x_t + mm(p["W_fh"], h) + p["b_f"])
        o = jax.nn.sigmoid(p["W_ox"] @ x_t + mm(p["W_oh"], h) + p["b_o"])
        c = g * i + c * f
        h = jnp.tanh(c) * o
    return (mm(p["W_ph"], h) + p["b_p"]).T


def init_params(key, seq_length, input_dim, num_hidden, num_classes, batch_size):
    ks = jax.random.split(key, 11)
    f32 = jnp.float32
    return {
        # nonzero initial state to exercise the broadcast paths
        "h_init": 0.1 * jax.random.normal(ks[9], (num_hidden, 1), f32),
        "c_init": 0.1 * jax.random.normal(ks[10], (num_hidden, batch_size), f32),
        "W_gx": jax.random.normal(ks[0], (num_hidden, input_dim), f32),
        "W_gh": jax.random.normal(ks[1], (num_hidden, num_hidden), f32),
        "b_g": jnp.zeros((num_hidden, 1), f32),
        "W_ix": jax.random.normal(ks[2], (num_hidden, input_dim), f32),
        "W_ih": jax.random.normal(ks[3], (num_hidden, num_hidden), f32),
        "b_i": jnp.zeros((num_hidden, 1), f32),
        "W_fx": jax.random.normal(ks[4], (num_hidden, input_dim), f32),
        "W_fh": jax.random.normal(ks[5], (num_hidden, num_hidden), f32),
        "b_f": jnp.zeros((num_hidden, 1), f32),
        "W_ox": jax.random.normal(ks[6], (num_hidden, input_dim), f32),
        "W_oh": jax.random.normal(ks[7], (num_hidden, num_hidden), f32),
        "b_o": jnp.zeros((num_hidden, 1), f32),
        "W_ph": jax.random.normal(ks[8], (num_classes, num_hidden), f32),
        "b_p": jnp.zeros((num_classes, 1), f32),
    }


if __name__ == "__main__":
    seq_length, input_dim, num_hidden, num_classes, batch_size = 8, 1, 32, 10, 2

    key = jax.random.PRNGKey(0)
    k_param, k_x = jax.random.split(key)
    params = init_params(k_param, seq_length, input_dim, num_hidden, num_classes,
                         batch_size)
    packed = pack_params(params)                  # packed once, off the call path
    x = jax.random.normal(k_x, (batch_size, seq_length), jnp.float32)

    out = jax.block_until_ready(lstm_forward(x, packed))
    assert out.shape == (batch_size, num_classes)

    # Tight check vs a reference that mirrors the kernel's bf16-MXU numerics
    # (validates packing / gate order / recurrence structure).
    ref_mixed = lstm_reference(x, params, mxu_dtype=jnp.bfloat16)
    assert jnp.allclose(out, ref_mixed, atol=2e-2, rtol=2e-2), \
        "mismatch vs bf16-MXU reference"

    # Looser sanity check vs the exact-f32 PyTorch transcription (bf16 MXU
    # operands shift numerics slightly, as anticipated by the review).
    ref_f32 = lstm_reference(x, params, mxu_dtype=jnp.float32)
    rel_err = jnp.linalg.norm(out - ref_f32) / jnp.linalg.norm(ref_f32)
    assert rel_err < 0.1, f"relative error vs f32 reference too large: {rel_err}"

    print("KERNEL_OK")
</pallas_src>

<mosaic_0001>
module attributes {stable_mosaic.version = 11 : i64} {
  func.func @lstm_kernel(%arg0: memref<8x2x1xf32, #tpu.memory_space<vmem>>, %arg1: memref<1x128xf32, #tpu.memory_space<vmem>>, %arg2: memref<1x128xf32, #tpu.memory_space<vmem>>, %arg3: memref<32x128xbf16, #tpu.memory_space<vmem>>, %arg4: memref<32x10xbf16, #tpu.memory_space<vmem>>, %arg5: memref<1x10xf32, #tpu.memory_space<vmem>>, %arg6: memref<2x32xf32, #tpu.memory_space<vmem>>, %arg7: memref<2x32xf32, #tpu.memory_space<vmem>>, %arg8: memref<2x10xf32, #tpu.memory_space<vmem>>) attributes {dimension_semantics = [], scalar_prefetch = 0 : i64, scratch_operands = 0 : i64, tpu.core_type = #tpu.core_type<tc>} {
    %c0 = arith.constant 0 : index
    %c0_0 = arith.constant 0 : index
    %0 = vector.load %arg1[%c0, %c0_0] : memref<1x128xf32, #tpu.memory_space<vmem>>, vector<1x128xf32>
    %c0_1 = arith.constant 0 : index
    %c0_2 = arith.constant 0 : index
    %1 = vector.load %arg2[%c0_1, %c0_2] : memref<1x128xf32, #tpu.memory_space<vmem>>, vector<1x128xf32>
    %c0_3 = arith.constant 0 : index
    %c0_4 = arith.constant 0 : index
    %2 = vector.load %arg3[%c0_3, %c0_4] : memref<32x128xbf16, #tpu.memory_space<vmem>>, vector<32x128xbf16>
    %c0_5 = arith.constant 0 : index
    %c0_6 = arith.constant 0 : index
    %3 = vector.load %arg6[%c0_5, %c0_6] : memref<2x32xf32, #tpu.memory_space<vmem>>, vector<2x32xf32>
    %c0_7 = arith.constant 0 : index
    %c0_8 = arith.constant 0 : index
    %4 = vector.load %arg7[%c0_7, %c0_8] : memref<2x32xf32, #tpu.memory_space<vmem>>, vector<2x32xf32>
    %c0_i32 = arith.constant 0 : i32
    %5 = arith.index_cast %c0_i32 : i32 to index
    %c0_9 = arith.constant 0 : index
    %c0_10 = arith.constant 0 : index
    %6 = vector.load %arg0[%5, %c0_9, %c0_10] : memref<8x2x1xf32, #tpu.memory_space<vmem>>, vector<1x2x1xf32>
    %7 = vector.shape_cast %6 : vector<1x2x1xf32> to vector<2x1xf32>
    %8 = vector.broadcast %7 : vector<2x1xf32> to vector<2x128xf32>
    %9 = vector.broadcast %0 : vector<1x128xf32> to vector<2x128xf32>
    %10 = arith.mulf %8, %9 : vector<2x128xf32>
    %11 = vector.broadcast %1 : vector<1x128xf32> to vector<2x128xf32>
    %12 = arith.addf %10, %11 : vector<2x128xf32>
    %13 = arith.truncf %3 : vector<2x32xf32> to vector<2x32xbf16>
    %cst = arith.constant dense<0.000000e+00> : vector<2x128xf32>
    %14 = tpu.matmul %13, %2, %cst {dimension_numbers = #tpu.dot_dimension_numbers<[1], [0], [0], [1], [0, 0, 1, 1], [], []>} : vector<2x32xbf16>, vector<32x128xbf16>, vector<2x128xf32> -> vector<2x128xf32>
    %15 = arith.addf %12, %14 : vector<2x128xf32>
    %16 = math.tanh %15 : vector<2x128xf32>
    %17 = arith.negf %15 : vector<2x128xf32>
    %18 = math.exp %17 : vector<2x128xf32>
    %cst_11 = arith.constant 1.000000e+00 : f32
    %19 = vector.broadcast %cst_11 : f32 to vector<2x128xf32>
    %20 = arith.addf %19, %18 : vector<2x128xf32>
    %21 = arith.divf %19, %20 : vector<2x128xf32>
    %22 = vector.extract_strided_slice %16 {offsets = [0, 0], sizes = [2, 32], strides = [1, 1]} : vector<2x128xf32> to vector<2x32xf32>
    %23 = vector.extract_strided_slice %21 {offsets = [0, 32], sizes = [2, 32], strides = [1, 1]} : vector<2x128xf32> to vector<2x32xf32>
    %24 = vector.extract_strided_slice %21 {offsets = [0, 64], sizes = [2, 32], strides = [1, 1]} : vector<2x128xf32> to vector<2x32xf32>
    %25 = vector.extract_strided_slice %21 {offsets = [0, 96], sizes = [2, 32], strides = [1, 1]} : vector<2x128xf32> to vector<2x32xf32>
    %26 = arith.mulf %22, %23 : vector<2x32xf32>
    %27 = arith.mulf %4, %24 : vector<2x32xf32>
    %28 = arith.addf %26, %27 : vector<2x32xf32>
    %29 = math.tanh %28 : vector<2x32xf32>
    %30 = arith.mulf %29, %25 : vector<2x32xf32>
    %c1_i32 = arith.constant 1 : i32
    %31 = arith.index_cast %c1_i32 : i32 to index
    %c0_12 = arith.constant 0 : index
    %c0_13 = arith.constant 0 : index
    %32 = vector.load %arg0[%31, %c0_12, %c0_13] : memref<8x2x1xf32, #tpu.memory_space<vmem>>, vector<1x2x1xf32>
    %33 = vector.shape_cast %32 : vector<1x2x1xf32> to vector<2x1xf32>
    %34 = vector.broadcast %33 : vector<2x1xf32> to vector<2x128xf32>
    %35 = vector.broadcast %0 : vector<1x128xf32> to vector<2x128xf32>
    %36 = arith.mulf %34, %35 : vector<2x128xf32>
    %37 = vector.broadcast %1 : vector<1x128xf32> to vector<2x128xf32>
    %38 = arith.addf %36, %37 : vector<2x128xf32>
    %39 = arith.truncf %30 : vector<2x32xf32> to vector<2x32xbf16>
    %cst_14 = arith.constant dense<0.000000e+00> : vector<2x128xf32>
    %40 = tpu.matmul %39, %2, %cst_14 {dimension_numbers = #tpu.dot_dimension_numbers<[1], [0], [0], [1], [0, 0, 1, 1], [], []>} : vector<2x32xbf16>, vector<32x128xbf16>, vector<2x128xf32> -> vector<2x128xf32>
    %41 = arith.addf %38, %40 : vector<2x128xf32>
    %42 = math.tanh %41 : vector<2x128xf32>
    %43 = arith.negf %41 : vector<2x128xf32>
    %44 = math.exp %43 : vector<2x128xf32>
    %cst_15 = arith.constant 1.000000e+00 : f32
    %45 = vector.broadcast %cst_15 : f32 to vector<2x128xf32>
    %46 = arith.addf %45, %44 : vector<2x128xf32>
    %47 = arith.divf %45, %46 : vector<2x128xf32>
    %48 = vector.extract_strided_slice %42 {offsets = [0, 0], sizes = [2, 32], strides = [1, 1]} : vector<2x128xf32> to vector<2x32xf32>
    %49 = vector.extract_strided_slice %47 {offsets = [0, 32], sizes = [2, 32], strides = [1, 1]} : vector<2x128xf32> to vector<2x32xf32>
    %50 = vector.extract_strided_slice %47 {offsets = [0, 64], sizes = [2, 32], strides = [1, 1]} : vector<2x128xf32> to vector<2x32xf32>
    %51 = vector.extract_strided_slice %47 {offsets = [0, 96], sizes = [2, 32], strides = [1, 1]} : vector<2x128xf32> to vector<2x32xf32>
    %52 = arith.mulf %48, %49 : vector<2x32xf32>
    %53 = arith.mulf %28, %50 : vector<2x32xf32>
    %54 = arith.addf %52, %53 : vector<2x32xf32>
    %55 = math.tanh %54 : vector<2x32xf32>
    %56 = arith.mulf %55, %51 : vector<2x32xf32>
    %c2_i32 = arith.constant 2 : i32
    %57 = arith.index_cast %c2_i32 : i32 to index
    %c0_16 = arith.constant 0 : index
    %c0_17 = arith.constant 0 : index
    %58 = vector.load %arg0[%57, %c0_16, %c0_17] : memref<8x2x1xf32, #tpu.memory_space<vmem>>, vector<1x2x1xf32>
    %59 = vector.shape_cast %58 : vector<1x2x1xf32> to vector<2x1xf32>
    %60 = vector.broadcast %59 : vector<2x1xf32> to vector<2x128xf32>
    %61 = vector.broadcast %0 : vector<1x128xf32> to vector<2x128xf32>
    %62 = arith.mulf %60, %61 : vector<2x128xf32>
    %63 = vector.broadcast %1 : vector<1x128xf32> to vector<2x128xf32>
    %64 = arith.addf %62, %63 : vector<2x128xf32>
    %65 = arith.truncf %56 : vector<2x32xf32> to vector<2x32xbf16>
    %cst_18 = arith.constant dense<0.000000e+00> : vector<2x128xf32>
    %66 = tpu.matmul %65, %2, %cst_18 {dimension_numbers = #tpu.dot_dimension_numbers<[1], [0], [0], [1], [0, 0, 1, 1], [], []>} : vector<2x32xbf16>, vector<32x128xbf16>, vector<2x128xf32> -> vector<2x128xf32>
    %67 = arith.addf %64, %66 : vector<2x128xf32>
    %68 = math.tanh %67 : vector<2x128xf32>
    %69 = arith.negf %67 : vector<2x128xf32>
    %70 = math.exp %69 : vector<2x128xf32>
    %cst_19 = arith.constant 1.000000e+00 : f32
    %71 = vector.broadcast %cst_19 : f32 to vector<2x128xf32>
    %72 = arith.addf %71, %70 : vector<2x128xf32>
    %73 = arith.divf %71, %72 : vector<2x128xf32>
    %74 = vector.extract_strided_slice %68 {offsets = [0, 0], sizes = [2, 32], strides = [1, 1]} : vector<2x128xf32> to vector<2x32xf32>
    %75 = vector.extract_strided_slice %73 {offsets = [0, 32], sizes = [2, 32], strides = [1, 1]} : vector<2x128xf32> to vector<2x32xf32>
    %76 = vector.extract_strided_slice %73 {offsets = [0, 64], sizes = [2, 32], strides = [1, 1]} : vector<2x128xf32> to vector<2x32xf32>
    %77 = vector.extract_strided_slice %73 {offsets = [0, 96], sizes = [2, 32], strides = [1, 1]} : vector<2x128xf32> to vector<2x32xf32>
    %78 = arith.mulf %74, %75 : vector<2x32xf32>
    %79 = arith.mulf %54, %76 : vector<2x32xf32>
    %80 = arith.addf %78, %79 : vector<2x32xf32>
    %81 = math.tanh %80 : vector<2x32xf32>
    %82 = arith.mulf %81, %77 : vector<2x32xf32>
    %c3_i32 = arith.constant 3 : i32
    %83 = arith.index_cast %c3_i32 : i32 to index
    %c0_20 = arith.constant 0 : index
    %c0_21 = arith.constant 0 : index
    %84 = vector.load %arg0[%83, %c0_20, %c0_21] : memref<8x2x1xf32, #tpu.memory_space<vmem>>, vector<1x2x1xf32>
    %85 = vector.shape_cast %84 : vector<1x2x1xf32> to vector<2x1xf32>
    %86 = vector.broadcast %85 : vector<2x1xf32> to vector<2x128xf32>
    %87 = vector.broadcast %0 : vector<1x128xf32> to vector<2x128xf32>
    %88 = arith.mulf %86, %87 : vector<2x128xf32>
    %89 = vector.broadcast %1 : vector<1x128xf32> to vector<2x128xf32>
    %90 = arith.addf %88, %89 : vector<2x128xf32>
    %91 = arith.truncf %82 : vector<2x32xf32> to vector<2x32xbf16>
    %cst_22 = arith.constant dense<0.000000e+00> : vector<2x128xf32>
    %92 = tpu.matmul %91, %2, %cst_22 {dimension_numbers = #tpu.dot_dimension_numbers<[1], [0], [0], [1], [0, 0, 1, 1], [], []>} : vector<2x32xbf16>, vector<32x128xbf16>, vector<2x128xf32> -> vector<2x128xf32>
    %93 = arith.addf %90, %92 : vector<2x128xf32>
    %94 = math.tanh %93 : vector<2x128xf32>
    %95 = arith.negf %93 : vector<2x128xf32>
    %96 = math.exp %95 : vector<2x128xf32>
    %cst_23 = arith.constant 1.000000e+00 : f32
    %97 = vector.broadcast %cst_23 : f32 to vector<2x128xf32>
    %98 = arith.addf %97, %96 : vector<2x128xf32>
    %99 = arith.divf %97, %98 : vector<2x128xf32>
    %100 = vector.extract_strided_slice %94 {offsets = [0, 0], sizes = [2, 32], strides = [1, 1]} : vector<2x128xf32> to vector<2x32xf32>
    %101 = vector.extract_strided_slice %99 {offsets = [0, 32], sizes = [2, 32], strides = [1, 1]} : vector<2x128xf32> to vector<2x32xf32>
    %102 = vector.extract_strided_slice %99 {offsets = [0, 64], sizes = [2, 32], strides = [1, 1]} : vector<2x128xf32> to vector<2x32xf32>
    %103 = vector.extract_strided_slice %99 {offsets = [0, 96], sizes = [2, 32], strides = [1, 1]} : vector<2x128xf32> to vector<2x32xf32>
    %104 = arith.mulf %100, %101 : vector<2x32xf32>
    %105 = arith.mulf %80, %102 : vector<2x32xf32>
    %106 = arith.addf %104, %105 : vector<2x32xf32>
    %107 = math.tanh %106 : vector<2x32xf32>
    %108 = arith.mulf %107, %103 : vector<2x32xf32>
    %c4_i32 = arith.constant 4 : i32
    %109 = arith.index_cast %c4_i32 : i32 to index
    %c0_24 = arith.constant 0 : index
    %c0_25 = arith.constant 0 : index
    %110 = vector.load %arg0[%109, %c0_24, %c0_25] : memref<8x2x1xf32, #tpu.memory_space<vmem>>, vector<1x2x1xf32>
    %111 = vector.shape_cast %110 : vector<1x2x1xf32> to vector<2x1xf32>
    %112 = vector.broadcast %111 : vector<2x1xf32> to vector<2x128xf32>
    %113 = vector.broadcast %0 : vector<1x128xf32> to vector<2x128xf32>
    %114 = arith.mulf %112, %113 : vector<2x128xf32>
    %115 = vector.broadcast %1 : vector<1x128xf32> to vector<2x128xf32>
    %116 = arith.addf %114, %115 : vector<2x128xf32>
    %117 = arith.truncf %108 : vector<2x32xf32> to vector<2x32xbf16>
    %cst_26 = arith.constant dense<0.000000e+00> : vector<2x128xf32>
    %118 = tpu.matmul %117, %2, %cst_26 {dimension_numbers = #tpu.dot_dimension_numbers<[1], [0], [0], [1], [0, 0, 1, 1], [], []>} : vector<2x32xbf16>, vector<32x128xbf16>, vector<2x128xf32> -> vector<2x128xf32>
    %119 = arith.addf %116, %118 : vector<2x128xf32>
    %120 = math.tanh %119 : vector<2x128xf32>
    %121 = arith.negf %119 : vector<2x128xf32>
    %122 = math.exp %121 : vector<2x128xf32>
    %cst_27 = arith.constant 1.000000e+00 : f32
    %123 = vector.broadcast %cst_27 : f32 to vector<2x128xf32>
    %124 = arith.addf %123, %122 : vector<2x128xf32>
    %125 = arith.divf %123, %124 : vector<2x128xf32>
    %126 = vector.extract_strided_slice %120 {offsets = [0, 0], sizes = [2, 32], strides = [1, 1]} : vector<2x128xf32> to vector<2x32xf32>
    %127 = vector.extract_strided_slice %125 {offsets = [0, 32], sizes = [2, 32], strides = [1, 1]} : vector<2x128xf32> to vector<2x32xf32>
    %128 = vector.extract_strided_slice %125 {offsets = [0, 64], sizes = [2, 32], strides = [1, 1]} : vector<2x128xf32> to vector<2x32xf32>
    %129 = vector.extract_strided_slice %125 {offsets = [0, 96], sizes = [2, 32], strides = [1, 1]} : vector<2x128xf32> to vector<2x32xf32>
    %130 = arith.mulf %126, %127 : vector<2x32xf32>
    %131 = arith.mulf %106, %128 : vector<2x32xf32>
    %132 = arith.addf %130, %131 : vector<2x32xf32>
    %133 = math.tanh %132 : vector<2x32xf32>
    %134 = arith.mulf %133, %129 : vector<2x32xf32>
    %c5_i32 = arith.constant 5 : i32
    %135 = arith.index_cast %c5_i32 : i32 to index
    %c0_28 = arith.constant 0 : index
    %c0_29 = arith.constant 0 : index
    %136 = vector.load %arg0[%135, %c0_28, %c0_29] : memref<8x2x1xf32, #tpu.memory_space<vmem>>, vector<1x2x1xf32>
    %137 = vector.shape_cast %136 : vector<1x2x1xf32> to vector<2x1xf32>
    %138 = vector.broadcast %137 : vector<2x1xf32> to vector<2x128xf32>
    %139 = vector.broadcast %0 : vector<1x128xf32> to vector<2x128xf32>
    %140 = arith.mulf %138, %139 : vector<2x128xf32>
    %141 = vector.broadcast %1 : vector<1x128xf32> to vector<2x128xf32>
    %142 = arith.addf %140, %141 : vector<2x128xf32>
    %143 = arith.truncf %134 : vector<2x32xf32> to vector<2x32xbf16>
    %cst_30 = arith.constant dense<0.000000e+00> : vector<2x128xf32>
    %144 = tpu.matmul %143, %2, %cst_30 {dimension_numbers = #tpu.dot_dimension_numbers<[1], [0], [0], [1], [0, 0, 1, 1], [], []>} : vector<2x32xbf16>, vector<32x128xbf16>, vector<2x128xf32> -> vector<2x128xf32>
    %145 = arith.addf %142, %144 : vector<2x128xf32>
    %146 = math.tanh %145 : vector<2x128xf32>
    %147 = arith.negf %145 : vector<2x128xf32>
    %148 = math.exp %147 : vector<2x128xf32>
    %cst_31 = arith.constant 1.000000e+00 : f32
    %149 = vector.broadcast %cst_31 : f32 to vector<2x128xf32>
    %150 = arith.addf %149, %148 : vector<2x128xf32>
    %151 = arith.divf %149, %150 : vector<2x128xf32>
    %152 = vector.extract_strided_slice %146 {offsets = [0, 0], sizes = [2, 32], strides = [1, 1]} : vector<2x128xf32> to vector<2x32xf32>
    %153 = vector.extract_strided_slice %151 {offsets = [0, 32], sizes = [2, 32], strides = [1, 1]} : vector<2x128xf32> to vector<2x32xf32>
    %154 = vector.extract_strided_slice %151 {offsets = [0, 64], sizes = [2, 32], strides = [1, 1]} : vector<2x128xf32> to vector<2x32xf32>
    %155 = vector.extract_strided_slice %151 {offsets = [0, 96], sizes = [2, 32], strides = [1, 1]} : vector<2x128xf32> to vector<2x32xf32>
    %156 = arith.mulf %152, %153 : vector<2x32xf32>
    %157 = arith.mulf %132, %154 : vector<2x32xf32>
    %158 = arith.addf %156, %157 : vector<2x32xf32>
    %159 = math.tanh %158 : vector<2x32xf32>
    %160 = arith.mulf %159, %155 : vector<2x32xf32>
    %c6_i32 = arith.constant 6 : i32
    %161 = arith.index_cast %c6_i32 : i32 to index
    %c0_32 = arith.constant 0 : index
    %c0_33 = arith.constant 0 : index
    %162 = vector.load %arg0[%161, %c0_32, %c0_33] : memref<8x2x1xf32, #tpu.memory_space<vmem>>, vector<1x2x1xf32>
    %163 = vector.shape_cast %162 : vector<1x2x1xf32> to vector<2x1xf32>
    %164 = vector.broadcast %163 : vector<2x1xf32> to vector<2x128xf32>
    %165 = vector.broadcast %0 : vector<1x128xf32> to vector<2x128xf32>
    %166 = arith.mulf %164, %165 : vector<2x128xf32>
    %167 = vector.broadcast %1 : vector<1x128xf32> to vector<2x128xf32>
    %168 = arith.addf %166, %167 : vector<2x128xf32>
    %169 = arith.truncf %160 : vector<2x32xf32> to vector<2x32xbf16>
    %cst_34 = arith.constant dense<0.000000e+00> : vector<2x128xf32>
    %170 = tpu.matmul %169, %2, %cst_34 {dimension_numbers = #tpu.dot_dimension_numbers<[1], [0], [0], [1], [0, 0, 1, 1], [], []>} : vector<2x32xbf16>, vector<32x128xbf16>, vector<2x128xf32> -> vector<2x128xf32>
    %171 = arith.addf %168, %170 : vector<2x128xf32>
    %172 = math.tanh %171 : vector<2x128xf32>
    %173 = arith.negf %171 : vector<2x128xf32>
    %174 = math.exp %173 : vector<2x128xf32>
    %cst_35 = arith.constant 1.000000e+00 : f32
    %175 = vector.broadcast %cst_35 : f32 to vector<2x128xf32>
    %176 = arith.addf %175, %174 : vector<2x128xf32>
    %177 = arith.divf %175, %176 : vector<2x128xf32>
    %178 = vector.extract_strided_slice %172 {offsets = [0, 0], sizes = [2, 32], strides = [1, 1]} : vector<2x128xf32> to vector<2x32xf32>
    %179 = vector.extract_strided_slice %177 {offsets = [0, 32], sizes = [2, 32], strides = [1, 1]} : vector<2x128xf32> to vector<2x32xf32>
    %180 = vector.extract_strided_slice %177 {offsets = [0, 64], sizes = [2, 32], strides = [1, 1]} : vector<2x128xf32> to vector<2x32xf32>
    %181 = vector.extract_strided_slice %177 {offsets = [0, 96], sizes = [2, 32], strides = [1, 1]} : vector<2x128xf32> to vector<2x32xf32>
    %182 = arith.mulf %178, %179 : vector<2x32xf32>
    %183 = arith.mulf %158, %180 : vector<2x32xf32>
    %184 = arith.addf %182, %183 : vector<2x32xf32>
    %185 = math.tanh %184 : vector<2x32xf32>
    %186 = arith.mulf %185, %181 : vector<2x32xf32>
    %c7_i32 = arith.constant 7 : i32
    %187 = arith.index_cast %c7_i32 : i32 to index
    %c0_36 = arith.constant 0 : index
    %c0_37 = arith.constant 0 : index
    %188 = vector.load %arg0[%187, %c0_36, %c0_37] : memref<8x2x1xf32, #tpu.memory_space<vmem>>, vector<1x2x1xf32>
    %189 = vector.shape_cast %188 : vector<1x2x1xf32> to vector<2x1xf32>
    %190 = vector.broadcast %189 : vector<2x1xf32> to vector<2x128xf32>
    %191 = vector.broadcast %0 : vector<1x128xf32> to vector<2x128xf32>
    %192 = arith.mulf %190, %191 : vector<2x128xf32>
    %193 = vector.broadcast %1 : vector<1x128xf32> to vector<2x128xf32>
    %194 = arith.addf %192, %193 : vector<2x128xf32>
    %195 = arith.truncf %186 : vector<2x32xf32> to vector<2x32xbf16>
    %cst_38 = arith.constant dense<0.000000e+00> : vector<2x128xf32>
    %196 = tpu.matmul %195, %2, %cst_38 {dimension_numbers = #tpu.dot_dimension_numbers<[1], [0], [0], [1], [0, 0, 1, 1], [], []>} : vector<2x32xbf16>, vector<32x128xbf16>, vector<2x128xf32> -> vector<2x128xf32>
    %197 = arith.addf %194, %196 : vector<2x128xf32>
    %198 = math.tanh %197 : vector<2x128xf32>
    %199 = arith.negf %197 : vector<2x128xf32>
    %200 = math.exp %199 : vector<2x128xf32>
    %cst_39 = arith.constant 1.000000e+00 : f32
    %201 = vector.broadcast %cst_39 : f32 to vector<2x128xf32>
    %202 = arith.addf %201, %200 : vector<2x128xf32>
    %203 = arith.divf %201, %202 : vector<2x128xf32>
    %204 = vector.extract_strided_slice %198 {offsets = [0, 0], sizes = [2, 32], strides = [1, 1]} : vector<2x128xf32> to vector<2x32xf32>
    %205 = vector.extract_strided_slice %203 {offsets = [0, 32], sizes = [2, 32], strides = [1, 1]} : vector<2x128xf32> to vector<2x32xf32>
    %206 = vector.extract_strided_slice %203 {offsets = [0, 64], sizes = [2, 32], strides = [1, 1]} : vector<2x128xf32> to vector<2x32xf32>
    %207 = vector.extract_strided_slice %203 {offsets = [0, 96], sizes = [2, 32], strides = [1, 1]} : vector<2x128xf32> to vector<2x32xf32>
    %208 = arith.mulf %204, %205 : vector<2x32xf32>
    %209 = arith.mulf %184, %206 : vector<2x32xf32>
    %210 = arith.addf %208, %209 : vector<2x32xf32>
    %211 = math.tanh %210 : vector<2x32xf32>
    %212 = arith.mulf %211, %207 : vector<2x32xf32>
    %c8_i32 = arith.constant 8 : i32
    %213 = arith.truncf %212 : vector<2x32xf32> to vector<2x32xbf16>
    %c0_40 = arith.constant 0 : index
    %c0_41 = arith.constant 0 : index
    %214 = vector.load %arg4[%c0_40, %c0_41] : memref<32x10xbf16, #tpu.memory_space<vmem>>, vector<32x10xbf16>
    %cst_42 = arith.constant dense<0.000000e+00> : vector<2x10xf32>
    %215 = tpu.matmul %213, %214, %cst_42 {dimension_numbers = #tpu.dot_dimension_numbers<[1], [0], [0], [1], [0, 0, 1, 1], [], []>} : vector<2x32xbf16>, vector<32x10xbf16>, vector<2x10xf32> -> vector<2x10xf32>
    %c0_43 = arith.constant 0 : index
    %c0_44 = arith.constant 0 : index
    %216 = vector.load %arg5[%c0_43, %c0_44] : memref<1x10xf32, #tpu.memory_space<vmem>>, vector<1x10xf32>
    %217 = vector.broadcast %216 : vector<1x10xf32> to vector<2x10xf32>
    %218 = arith.addf %215, %217 : vector<2x10xf32>
    %c0_45 = arith.constant 0 : index
    %c0_46 = arith.constant 0 : index
    %219 = vector.load %arg8[%c0_45, %c0_46] : memref<2x10xf32, #tpu.memory_space<vmem>>, vector<2x10xf32>
    tpu.vector_store %arg8[%c0_45, %c0_46], %218 {strides = array<i32>} : memref<2x10xf32, #tpu.memory_space<vmem>>, vector<2x10xf32>,
    return
  }
}

</mosaic_0001>

<llo_original>
// kernel: lstm_forward.1
$region0: #{lstm_forward.1}
  #allocation0 [shape = 'u32[]', space=smem, size = 0x4, offset = 0x4, fixed_abs, tag = 'smem constant byte address 0x4 - core index']
  #allocation1 [shape = 'u32[144,128]{1,0:T(1,128)}', space=vmem, size = 0x12000, scoped, tag = 'internal scratch']
  %s0 = inlined_call_operand.vmem [shape: f32[8,2,1], index: 0, kind: input, shape index: {}]
  %s1 = inlined_call_operand.vmem [shape: f32[1,128], index: 1, kind: input, shape index: {}]
  %s2 = inlined_call_operand.vmem [shape: f32[1,128], index: 2, kind: input, shape index: {}]
  %s3 = inlined_call_operand.vmem [shape: bf16[32,128], index: 3, kind: input, shape index: {}]
  %s4 = inlined_call_operand.vmem [shape: bf16[32,10], index: 4, kind: input, shape index: {}]
  %s5 = inlined_call_operand.vmem [shape: f32[1,10], index: 5, kind: input, shape index: {}]
  %s6 = inlined_call_operand.vmem [shape: f32[2,32], index: 6, kind: input, shape index: {}]
  %s7 = inlined_call_operand.vmem [shape: f32[2,32], index: 7, kind: input, shape index: {}]
  %s8 = inlined_call_operand.hbm [shape: f32[2,10], index: 8, kind: output, shape index: {}]
  %s9 = sld [smem:[#allocation0]]
  $region42: #{lstm_forward.1} parent=0
    _
  %s11 = ssub.s32 1, %s9
  %s12 = scalar_select 0, %s11, %s9
  $region1: #{lstm_forward.1} parent=0
    #allocation2 [shape = 'u8[1024]{0}', space=vmem, size = 0x400, scoped, tag = 'output window, operand 0, single buffered']
    #allocation3 [shape = 's32[1]{0}', space=sflag, size = 0x4, scoped, tag = 'scoped memory for lstm_forward.1']
    %13 = vsyncpa [#allocation3], 0
    // Predicated region
    $region2: #{lstm_forward.1} parent=1 // pred_check
      _
    $region3: #{lstm_forward.1} parent=1 // pred_check_branch
      %15 = sbr.rel (0) target = $region5
    $region4: #{lstm_forward.1} parent=1 // pred_region
      _
    $region5: #{lstm_forward.1} parent=1 // pred_fallthru
      _
    // Predicated region
    $region6: #{lstm_forward.1} parent=1 // pred_check
      _
    $region7: #{lstm_forward.1} parent=1 // pred_check_branch
      %17 = sbr.rel (0) target = $region9
    $region8: #{lstm_forward.1} parent=1 // pred_region
      _
    $region9: #{lstm_forward.1} parent=1 // pred_fallthru
      _
    // Predicated region
    $region10: #{lstm_forward.1} parent=1 // pred_check
      _
    $region11: #{lstm_forward.1} parent=1 // pred_check_branch
      %19 = sbr.rel (0) target = $region13
    $region12: #{lstm_forward.1} parent=1 // pred_region
      _
    $region13: #{lstm_forward.1} parent=1 // pred_fallthru
      _
    // Predicated region
    $region14: #{lstm_forward.1} parent=1 // pred_check
      _
    $region15: #{lstm_forward.1} parent=1 // pred_check_branch
      %21 = sbr.rel (0) target = $region17
    $region16: #{lstm_forward.1} parent=1 // pred_region
      _
    $region17: #{lstm_forward.1} parent=1 // pred_fallthru
      _
    // Predicated region
    $region18: #{lstm_forward.1} parent=1 // pred_check
      _
    $region19: #{lstm_forward.1} parent=1 // pred_check_branch
      %23 = sbr.rel (0) target = $region21
    $region20: #{lstm_forward.1} parent=1 // pred_region
      _
    $region21: #{lstm_forward.1} parent=1 // pred_fallthru
      _
    // Predicated region
    $region22: #{lstm_forward.1} parent=1 // pred_check
      _
    $region23: #{lstm_forward.1} parent=1 // pred_check_branch
      %25 = sbr.rel (0) target = $region25
    $region24: #{lstm_forward.1} parent=1 // pred_region
      _
    $region25: #{lstm_forward.1} parent=1 // pred_fallthru
      _
    // Predicated region
    $region26: #{lstm_forward.1} parent=1 // pred_check
      _
    $region27: #{lstm_forward.1} parent=1 // pred_check_branch
      %27 = sbr.rel (0) target = $region29
    $region28: #{lstm_forward.1} parent=1 // pred_region
      _
    $region29: #{lstm_forward.1} parent=1 // pred_fallthru
      _
    // Predicated region
    $region30: #{lstm_forward.1} parent=1 // pred_check
      _
    $region31: #{lstm_forward.1} parent=1 // pred_check_branch
      %29 = sbr.rel (0) target = $region33
    $region32: #{lstm_forward.1} parent=1 // pred_region
      _
    $region33: #{lstm_forward.1} parent=1 // pred_fallthru
      _
    %v31 = vld [vmem:[%s1] sm:$0x1]
    %v32 = vld [vmem:[%s2] sm:$0x1]
    %v33 = vld [vmem:[%s3] sm:$0xf]
    %v34 = vld [vmem:[%s3 + $0x4] sm:$0xf]
    %v35 = vld [vmem:[%s3 + $0x8] sm:$0xf]
    %v36 = vld [vmem:[%s3 + $0xc] sm:$0xf]
    %v37 = vld [vmem:[%s6] sm:$0x3]
    %v38 = vld [vmem:[%s7] sm:$0x3]
    %v39 = vld [vmem:[%s0] sm:$0x3]
    %41 = vset.pattern.permute.xlu0 0
    %42 = vperm.xlu0 %41, %v39
    %v43 = vpop.permute.xlu0 %42
    %v46 = vlaneseq
    %v47 = vshrl.u32 %v46, 7
    %v48 = vsub.s32 0, %v47
    %v49 = vrot.slane %v31, %v48
    %v51 = vmul.f32 %v43, %v49
    %v53 = vlaneseq
    %v54 = vshrl.u32 %v53, 7
    %v55 = vsub.s32 0, %v54
    %v56 = vrot.slane %v32, %v55
    %v58 = vadd.f32 %v51, %v56
    %v59 = vpack.c.bf16 %v37, %v37
    %v64 = vunpack.c.l.b16 %v33
    %v65 = vunpack.c.l.b16 %v34
    %v66 = vunpack.c.l.b16 %v35
    %v67 = vunpack.c.l.b16 %v36
    %v68 = vpack.c.b16 %v65, %v64
    %v69 = vpack.c.b16 %v67, %v66
    %vm72 = vcmask 261120
    %v74 = vsel %vm72, %v59, 0
    %76 = vmatprep.subr.bf16.mxu0 0
    %77 = vmatpush1.bf16.msra.mxu0 0
    %78 = vmatprep.subr.bf16.mxu0 0
    %79 = vmatpush1.bf16.msra.mxu0 0
    %80 = vmatprep.subr.bf16.mxu0 0
    %81 = vmatpush1.bf16.msra.mxu0 0
    %82 = vmatprep.subr.bf16.mxu0 0
    %83 = vmatpush1.bf16.msra.mxu0 0
    %84 = vmatprep.subr.bf16.mxu0 0
    %85 = vmatpush1.bf16.msra.mxu0 0
    %86 = vmatprep.subr.bf16.mxu0 0
    %87 = vmatpush1.bf16.msra.mxu0 0
    %88 = vmatprep.subr.bf16.mxu0 0
    %89 = vmatpush1.bf16.msra.mxu0 %v69
    %90 = vmatprep.subr.bf16.mxu0 0
    %91 = vmatpush1.bf16.msra.mxu0 %v68
    %92 = vmatprep.subr.bf16.mxu0 0
    %93 = vmatpush2.bf16.msra.mxu0 0
    %94 = vmatprep.subr.bf16.mxu0 0
    %95 = vmatpush2.bf16.msra.mxu0 0
    %96 = vmatprep.subr.bf16.mxu0 0
    %97 = vmatpush2.bf16.msra.mxu0 0
    %98 = vmatprep.subr.bf16.mxu0 0
    %99 = vmatpush2.bf16.msra.mxu0 0
    %100 = vmatprep.subr.bf16.mxu0 0
    %101 = vmatpush2.bf16.msra.mxu0 0
    %102 = vmatprep.subr.bf16.mxu0 0
    %103 = vmatpush2.bf16.msra.mxu0 0
    %104 = vmatprep.subr.bf16.mxu0 0
    %105 = vmatpush2.bf16.msra.mxu0 0
    %106 = vmatprep.subr.bf16.mxu0 0
    %107 = vmatpush2.bf16.msra.mxu0 0
    %108 = vmatprep.mubr.bf16.mxu0 0
    %109 = vmatmul.mubr.bf16.gmra.mxu0 %v74
    %v110 = vpop.f32.mrf.mxu0
    %v111 = vadd.f32 0.0, %v110
    %v112 = vpop.f32.mrf.mxu0
    %v113 = vpop.f32.mrf.mxu0
    %v114 = vpop.f32.mrf.mxu0
    %115 = vdwg.mxu0
    %v116 = vadd.f32 %v58, %v111
    %v117 = vtanh.pop %v116
    %v118 = vxor.u32 %v116, 2147483648
    %v119 = vmul.f32 %v118, 1.442695
    %v120 = vpow.pop %v119
    %v121 = vadd.f32 %v120, 1.0
    %v122 = vrcp.pop %v121
    %v123 = vmul.f32 1.0, %v122
    %125 = vrot.lane.b32.xlu0 %v123, 96
    %v126 = vpop.permute.xlu0 %125
    %v128 = vmul.f32 %v117, %v126
    %129 = vrot.lane.b32.xlu0 %v123, 64
    %v130 = vpop.permute.xlu0 %129
    %v132 = vmul.f32 %v38, %v130
    %v133 = vadd.f32 %v128, %v132
    %v134 = vtanh.pop %v133
    %135 = vrot.lane.b32.xlu0 %v123, 32
    %v136 = vpop.permute.xlu0 %135
    %v138 = vmul.f32 %v134, %v136
    %s139 = scalar_lea.vmem %s0, 2
    %v140 = vld [vmem:[%s139] sm:$0x3]
    %142 = vset.pattern.permute.xlu0 0
    %143 = vperm.xlu0 %142, %v140
    %v144 = vpop.permute.xlu0 %143
    %v146 = vmul.f32 %v144, %v49
    %v147 = vadd.f32 %v146, %v56
    %v148 = vpack.c.bf16 %v138, %v138
    %v150 = vsel %vm72, %v148, 0
    %152 = vmatprep.subr.bf16.mxu0 0
    %153 = vmatpush1.bf16.msra.mxu0 0
    %154 = vmatprep.subr.bf16.mxu0 0
    %155 = vmatpush1.bf16.msra.mxu0 0
    %156 = vmatprep.subr.bf16.mxu0 0
    %157 = vmatpush1.bf16.msra.mxu0 0
    %158 = vmatprep.subr.bf16.mxu0 0
    %159 = vmatpush1.bf16.msra.mxu0 0
    %160 = vmatprep.subr.bf16.mxu0 0
    %161 = vmatpush1.bf16.msra.mxu0 0
    %162 = vmatprep.subr.bf16.mxu0 0
    %163 = vmatpush1.bf16.msra.mxu0 0
    %164 = vmatprep.subr.bf16.mxu0 0
    %165 = vmatpush1.bf16.msra.mxu0 %v69
    %166 = vmatprep.subr.bf16.mxu0 0
    %167 = vmatpush1.bf16.msra.mxu0 %v68
    %168 = vmatprep.subr.bf16.mxu0 0
    %169 = vmatpush2.bf16.msra.mxu0 0
    %170 = vmatprep.subr.bf16.mxu0 0
    %171 = vmatpush2.bf16.msra.mxu0 0
    %172 = vmatprep.subr.bf16.mxu0 0
    %173 = vmatpush2.bf16.msra.mxu0 0
    %174 = vmatprep.subr.bf16.mxu0 0
    %175 = vmatpush2.bf16.msra.mxu0 0
    %176 = vmatprep.subr.bf16.mxu0 0
    %177 = vmatpush2.bf16.msra.mxu0 0
    %178 = vmatprep.subr.bf16.mxu0 0
    %179 = vmatpush2.bf16.msra.mxu0 0
    %180 = vmatprep.subr.bf16.mxu0 0
    %181 = vmatpush2.bf16.msra.mxu0 0
    %182 = vmatprep.subr.bf16.mxu0 0
    %183 = vmatpush2.bf16.msra.mxu0 0
    %184 = vmatprep.mubr.bf16.mxu0 0
    %185 = vmatmul.mubr.bf16.gmra.mxu0 %v150
    %v186 = vpop.f32.mrf.mxu0
    %v187 = vadd.f32 0.0, %v186
    %v188 = vpop.f32.mrf.mxu0
    %v189 = vpop.f32.mrf.mxu0
    %v190 = vpop.f32.mrf.mxu0
    %191 = vdwg.mxu0
    %v192 = vadd.f32 %v147, %v187
    %v193 = vtanh.pop %v192
    %v194 = vxor.u32 %v192, 2147483648
    %v195 = vmul.f32 %v194, 1.442695
    %v196 = vpow.pop %v195
    %v197 = vadd.f32 %v196, 1.0
    %v198 = vrcp.pop %v197
    %v199 = vmul.f32 1.0, %v198
    %201 = vrot.lane.b32.xlu0 %v199, 96
    %v202 = vpop.permute.xlu0 %201
    %v204 = vmul.f32 %v193, %v202
    %205 = vrot.lane.b32.xlu0 %v199, 64
    %v206 = vpop.permute.xlu0 %205
    %v208 = vmul.f32 %v133, %v206
    %v209 = vadd.f32 %v204, %v208
    %v210 = vtanh.pop %v209
    %211 = vrot.lane.b32.xlu0 %v199, 32
    %v212 = vpop.permute.xlu0 %211
    %v214 = vmul.f32 %v210, %v212
    %s215 = scalar_lea.vmem %s0, 4
    %v216 = vld [vmem:[%s215] sm:$0x3]
    %218 = vset.pattern.permute.xlu0 0
    %219 = vperm.xlu0 %218, %v216
    %v220 = vpop.permute.xlu0 %219
    %v222 = vmul.f32 %v220, %v49
    %v223 = vadd.f32 %v222, %v56
    %v224 = vpack.c.bf16 %v214, %v214
    %v226 = vsel %vm72, %v224, 0
    %228 = vmatprep.subr.bf16.mxu0 0
    %229 = vmatpush1.bf16.msra.mxu0 0
    %230 = vmatprep.subr.bf16.mxu0 0
    %231 = vmatpush1.bf16.msra.mxu0 0
    %232 = vmatprep.subr.bf16.mxu0 0
    %233 = vmatpush1.bf16.msra.mxu0 0
    %234 = vmatprep.subr.bf16.mxu0 0
    %235 = vmatpush1.bf16.msra.mxu0 0
    %236 = vmatprep.subr.bf16.mxu0 0
    %237 = vmatpush1.bf16.msra.mxu0 0
    %238 = vmatprep.subr.bf16.mxu0 0
    %239 = vmatpush1.bf16.msra.mxu0 0
    %240 = vmatprep.subr.bf16.mxu0 0
    %241 = vmatpush1.bf16.msra.mxu0 %v69
    %242 = vmatprep.subr.bf16.mxu0 0
    %243 = vmatpush1.bf16.msra.mxu0 %v68
    %244 = vmatprep.subr.bf16.mxu0 0
    %245 = vmatpush2.bf16.msra.mxu0 0
    %246 = vmatprep.subr.bf16.mxu0 0
    %247 = vmatpush2.bf16.msra.mxu0 0
    %248 = vmatprep.subr.bf16.mxu0 0
    %249 = vmatpush2.bf16.msra.mxu0 0
    %250 = vmatprep.subr.bf16.mxu0 0
    %251 = vmatpush2.bf16.msra.mxu0 0
    %252 = vmatprep.subr.bf16.mxu0 0
    %253 = vmatpush2.bf16.msra.mxu0 0
    %254 = vmatprep.subr.bf16.mxu0 0
    %255 = vmatpush2.bf16.msra.mxu0 0
    %256 = vmatprep.subr.bf16.mxu0 0
    %257 = vmatpush2.bf16.msra.mxu0 0
    %258 = vmatprep.subr.bf16.mxu0 0
    %259 = vmatpush2.bf16.msra.mxu0 0
    %260 = vmatprep.mubr.bf16.mxu0 0
    %261 = vmatmul.mubr.bf16.gmra.mxu0 %v226
    %v262 = vpop.f32.mrf.mxu0
    %v263 = vadd.f32 0.0, %v262
    %v264 = vpop.f32.mrf.mxu0
    %v265 = vpop.f32.mrf.mxu0
    %v266 = vpop.f32.mrf.mxu0
    %267 = vdwg.mxu0
    %v268 = vadd.f32 %v223, %v263
    %v269 = vtanh.pop %v268
    %v270 = vxor.u32 %v268, 2147483648
    %v271 = vmul.f32 %v270, 1.442695
    %v272 = vpow.pop %v271
    %v273 = vadd.f32 %v272, 1.0
    %v274 = vrcp.pop %v273
    %v275 = vmul.f32 1.0, %v274
    %277 = vrot.lane.b32.xlu0 %v275, 96
    %v278 = vpop.permute.xlu0 %277
    %v280 = vmul.f32 %v269, %v278
    %281 = vrot.lane.b32.xlu0 %v275, 64
    %v282 = vpop.permute.xlu0 %281
    %v284 = vmul.f32 %v209, %v282
    %v285 = vadd.f32 %v280, %v284
    %v286 = vtanh.pop %v285
    %287 = vrot.lane.b32.xlu0 %v275, 32
    %v288 = vpop.permute.xlu0 %287
    %v290 = vmul.f32 %v286, %v288
    %s291 = scalar_lea.vmem %s0, 6
    %v292 = vld [vmem:[%s291] sm:$0x3]
    %294 = vset.pattern.permute.xlu0 0
    %295 = vperm.xlu0 %294, %v292
    %v296 = vpop.permute.xlu0 %295
    %v298 = vmul.f32 %v296, %v49
    %v299 = vadd.f32 %v298, %v56
    %v300 = vpack.c.bf16 %v290, %v290
    %v302 = vsel %vm72, %v300, 0
    %304 = vmatprep.subr.bf16.mxu0 0
    %305 = vmatpush1.bf16.msra.mxu0 0
    %306 = vmatprep.subr.bf16.mxu0 0
    %307 = vmatpush1.bf16.msra.mxu0 0
    %308 = vmatprep.subr.bf16.mxu0 0
    %309 = vmatpush1.bf16.msra.mxu0 0
    %310 = vmatprep.subr.bf16.mxu0 0
    %311 = vmatpush1.bf16.msra.mxu0 0
    %312 = vmatprep.subr.bf16.mxu0 0
    %313 = vmatpush1.bf16.msra.mxu0 0
    %314 = vmatprep.subr.bf16.mxu0 0
    %315 = vmatpush1.bf16.msra.mxu0 0
    %316 = vmatprep.subr.bf16.mxu0 0
    %317 = vmatpush1.bf16.msra.mxu0 %v69
    %318 = vmatprep.subr.bf16.mxu0 0
    %319 = vmatpush1.bf16.msra.mxu0 %v68
    %320 = vmatprep.subr.bf16.mxu0 0
    %321 = vmatpush2.bf16.msra.mxu0 0
    %322 = vmatprep.subr.bf16.mxu0 0
    %323 = vmatpush2.bf16.msra.mxu0 0
    %324 = vmatprep.subr.bf16.mxu0 0
    %325 = vmatpush2.bf16.msra.mxu0 0
    %326 = vmatprep.subr.bf16.mxu0 0
    %327 = vmatpush2.bf16.msra.mxu0 0
    %328 = vmatprep.subr.bf16.mxu0 0
    %329 = vmatpush2.bf16.msra.mxu0 0
    %330 = vmatprep.subr.bf16.mxu0 0
    %331 = vmatpush2.bf16.msra.mxu0 0
    %332 = vmatprep.subr.bf16.mxu0 0
    %333 = vmatpush2.bf16.msra.mxu0 0
    %334 = vmatprep.subr.bf16.mxu0 0
    %335 = vmatpush2.bf16.msra.mxu0 0
    %336 = vmatprep.mubr.bf16.mxu0 0
    %337 = vmatmul.mubr.bf16.gmra.mxu0 %v302
    %v338 = vpop.f32.mrf.mxu0
    %v339 = vadd.f32 0.0, %v338
    %v340 = vpop.f32.mrf.mxu0
    %v341 = vpop.f32.mrf.mxu0
    %v342 = vpop.f32.mrf.mxu0
    %343 = vdwg.mxu0
    %v344 = vadd.f32 %v299, %v339
    %v345 = vtanh.pop %v344
    %v346 = vxor.u32 %v344, 2147483648
    %v347 = vmul.f32 %v346, 1.442695
    %v348 = vpow.pop %v347
    %v349 = vadd.f32 %v348, 1.0
    %v350 = vrcp.pop %v349
    %v351 = vmul.f32 1.0, %v350
    %353 = vrot.lane.b32.xlu0 %v351, 96
    %v354 = vpop.permute.xlu0 %353
    %v356 = vmul.f32 %v345, %v354
    %357 = vrot.lane.b32.xlu0 %v351, 64
    %v358 = vpop.permute.xlu0 %357
    %v360 = vmul.f32 %v285, %v358
    %v361 = vadd.f32 %v356, %v360
    %v362 = vtanh.pop %v361
    %363 = vrot.lane.b32.xlu0 %v351, 32
    %v364 = vpop.permute.xlu0 %363
    %v366 = vmul.f32 %v362, %v364
    %s367 = scalar_lea.vmem %s0, 8
    %v368 = vld [vmem:[%s367] sm:$0x3]
    %370 = vset.pattern.permute.xlu0 0
    %371 = vperm.xlu0 %370, %v368
    %v372 = vpop.permute.xlu0 %371
    %v374 = vmul.f32 %v372, %v49
    %v375 = vadd.f32 %v374, %v56
    %v376 = vpack.c.bf16 %v366, %v366
    %v378 = vsel %vm72, %v376, 0
    %380 = vmatprep.subr.bf16.mxu0 0
    %381 = vmatpush1.bf16.msra.mxu0 0
    %382 = vmatprep.subr.bf16.mxu0 0
    %383 = vmatpush1.bf16.msra.mxu0 0
    %384 = vmatprep.subr.bf16.mxu0 0
    %385 = vmatpush1.bf16.msra.mxu0 0
    %386 = vmatprep.subr.bf16.mxu0 0
    %387 = vmatpush1.bf16.msra.mxu0 0
    %388 = vmatprep.subr.bf16.mxu0 0
    %389 = vmatpush1.bf16.msra.mxu0 0
    %390 = vmatprep.subr.bf16.mxu0 0
    %391 = vmatpush1.bf16.msra.mxu0 0
    %392 = vmatprep.subr.bf16.mxu0 0
    %393 = vmatpush1.bf16.msra.mxu0 %v69
    %394 = vmatprep.subr.bf16.mxu0 0
    %395 = vmatpush1.bf16.msra.mxu0 %v68
    %396 = vmatprep.subr.bf16.mxu0 0
    %397 = vmatpush2.bf16.msra.mxu0 0
    %398 = vmatprep.subr.bf16.mxu0 0
    %399 = vmatpush2.bf16.msra.mxu0 0
    %400 = vmatprep.subr.bf16.mxu0 0
    %401 = vmatpush2.bf16.msra.mxu0 0
    %402 = vmatprep.subr.bf16.mxu0 0
    %403 = vmatpush2.bf16.msra.mxu0 0
    %404 = vmatprep.subr.bf16.mxu0 0
    %405 = vmatpush2.bf16.msra.mxu0 0
    %406 = vmatprep.subr.bf16.mxu0 0
    %407 = vmatpush2.bf16.msra.mxu0 0
    %408 = vmatprep.subr.bf16.mxu0 0
    %409 = vmatpush2.bf16.msra.mxu0 0
    %410 = vmatprep.subr.bf16.mxu0 0
    %411 = vmatpush2.bf16.msra.mxu0 0
    %412 = vmatprep.mubr.bf16.mxu0 0
    %413 = vmatmul.mubr.bf16.gmra.mxu0 %v378
    %v414 = vpop.f32.mrf.mxu0
    %v415 = vadd.f32 0.0, %v414
    %v416 = vpop.f32.mrf.mxu0
    %v417 = vpop.f32.mrf.mxu0
    %v418 = vpop.f32.mrf.mxu0
    %419 = vdwg.mxu0
    %v420 = vadd.f32 %v375, %v415
    %v421 = vtanh.pop %v420
    %v422 = vxor.u32 %v420, 2147483648
    %v423 = vmul.f32 %v422, 1.442695
    %v424 = vpow.pop %v423
    %v425 = vadd.f32 %v424, 1.0
    %v426 = vrcp.pop %v425
    %v427 = vmul.f32 1.0, %v426
    %429 = vrot.lane.b32.xlu0 %v427, 96
    %v430 = vpop.permute.xlu0 %429
    %v432 = vmul.f32 %v421, %v430
    %433 = vrot.lane.b32.xlu0 %v427, 64
    %v434 = vpop.permute.xlu0 %433
    %v436 = vmul.f32 %v361, %v434
    %v437 = vadd.f32 %v432, %v436
    %v438 = vtanh.pop %v437
    %439 = vrot.lane.b32.xlu0 %v427, 32
    %v440 = vpop.permute.xlu0 %439
    %v442 = vmul.f32 %v438, %v440
    %s443 = scalar_lea.vmem %s0, 10
    %v444 = vld [vmem:[%s443] sm:$0x3]
    %446 = vset.pattern.permute.xlu0 0
    %447 = vperm.xlu0 %446, %v444
    %v448 = vpop.permute.xlu0 %447
    %v450 = vmul.f32 %v448, %v49
    %v451 = vadd.f32 %v450, %v56
    %v452 = vpack.c.bf16 %v442, %v442
    %v454 = vsel %vm72, %v452, 0
    %456 = vmatprep.subr.bf16.mxu0 0
    %457 = vmatpush1.bf16.msra.mxu0 0
    %458 = vmatprep.subr.bf16.mxu0 0
    %459 = vmatpush1.bf16.msra.mxu0 0
    %460 = vmatprep.subr.bf16.mxu0 0
    %461 = vmatpush1.bf16.msra.mxu0 0
    %462 = vmatprep.subr.bf16.mxu0 0
    %463 = vmatpush1.bf16.msra.mxu0 0
    %464 = vmatprep.subr.bf16.mxu0 0
    %465 = vmatpush1.bf16.msra.mxu0 0
    %466 = vmatprep.subr.bf16.mxu0 0
    %467 = vmatpush1.bf16.msra.mxu0 0
    %468 = vmatprep.subr.bf16.mxu0 0
    %469 = vmatpush1.bf16.msra.mxu0 %v69
    %470 = vmatprep.subr.bf16.mxu0 0
    %471 = vmatpush1.bf16.msra.mxu0 %v68
    %472 = vmatprep.subr.bf16.mxu0 0
    %473 = vmatpush2.bf16.msra.mxu0 0
    %474 = vmatprep.subr.bf16.mxu0 0
    %475 = vmatpush2.bf16.msra.mxu0 0
    %476 = vmatprep.subr.bf16.mxu0 0
    %477 = vmatpush2.bf16.msra.mxu0 0
    %478 = vmatprep.subr.bf16.mxu0 0
    %479 = vmatpush2.bf16.msra.mxu0 0
    %480 = vmatprep.subr.bf16.mxu0 0
    %481 = vmatpush2.bf16.msra.mxu0 0
    %482 = vmatprep.subr.bf16.mxu0 0
    %483 = vmatpush2.bf16.msra.mxu0 0
    %484 = vmatprep.subr.bf16.mxu0 0
    %485 = vmatpush2.bf16.msra.mxu0 0
    %486 = vmatprep.subr.bf16.mxu0 0
    %487 = vmatpush2.bf16.msra.mxu0 0
    %488 = vmatprep.mubr.bf16.mxu0 0
    %489 = vmatmul.mubr.bf16.gmra.mxu0 %v454
    %v490 = vpop.f32.mrf.mxu0
    %v491 = vadd.f32 0.0, %v490
    %v492 = vpop.f32.mrf.mxu0
    %v493 = vpop.f32.mrf.mxu0
    %v494 = vpop.f32.mrf.mxu0
    %495 = vdwg.mxu0
    %v496 = vadd.f32 %v451, %v491
    %v497 = vtanh.pop %v496
    %v498 = vxor.u32 %v496, 2147483648
    %v499 = vmul.f32 %v498, 1.442695
    %v500 = vpow.pop %v499
    %v501 = vadd.f32 %v500, 1.0
    %v502 = vrcp.pop %v501
    %v503 = vmul.f32 1.0, %v502
    %505 = vrot.lane.b32.xlu0 %v503, 96
    %v506 = vpop.permute.xlu0 %505
    %v508 = vmul.f32 %v497, %v506
    %509 = vrot.lane.b32.xlu0 %v503, 64
    %v510 = vpop.permute.xlu0 %509
    %v512 = vmul.f32 %v437, %v510
    %v513 = vadd.f32 %v508, %v512
    %v514 = vtanh.pop %v513
    %515 = vrot.lane.b32.xlu0 %v503, 32
    %v516 = vpop.permute.xlu0 %515
    %v518 = vmul.f32 %v514, %v516
    %s519 = scalar_lea.vmem %s0, 12
    %v520 = vld [vmem:[%s519] sm:$0x3]
    %522 = vset.pattern.permute.xlu0 0
    %523 = vperm.xlu0 %522, %v520
    %v524 = vpop.permute.xlu0 %523
    %v526 = vmul.f32 %v524, %v49
    %v527 = vadd.f32 %v526, %v56
    %v528 = vpack.c.bf16 %v518, %v518
    %v530 = vsel %vm72, %v528, 0
    %532 = vmatprep.subr.bf16.mxu0 0
    %533 = vmatpush1.bf16.msra.mxu0 0
    %534 = vmatprep.subr.bf16.mxu0 0
    %535 = vmatpush1.bf16.msra.mxu0 0
    %536 = vmatprep.subr.bf16.mxu0 0
    %537 = vmatpush1.bf16.msra.mxu0 0
    %538 = vmatprep.subr.bf16.mxu0 0
    %539 = vmatpush1.bf16.msra.mxu0 0
    %540 = vmatprep.subr.bf16.mxu0 0
    %541 = vmatpush1.bf16.msra.mxu0 0
    %542 = vmatprep.subr.bf16.mxu0 0
    %543 = vmatpush1.bf16.msra.mxu0 0
    %544 = vmatprep.subr.bf16.mxu0 0
    %545 = vmatpush1.bf16.msra.mxu0 %v69
    %546 = vmatprep.subr.bf16.mxu0 0
    %547 = vmatpush1.bf16.msra.mxu0 %v68
    %548 = vmatprep.subr.bf16.mxu0 0
    %549 = vmatpush2.bf16.msra.mxu0 0
    %550 = vmatprep.subr.bf16.mxu0 0
    %551 = vmatpush2.bf16.msra.mxu0 0
    %552 = vmatprep.subr.bf16.mxu0 0
    %553 = vmatpush2.bf16.msra.mxu0 0
    %554 = vmatprep.subr.bf16.mxu0 0
    %555 = vmatpush2.bf16.msra.mxu0 0
    %556 = vmatprep.subr.bf16.mxu0 0
    %557 = vmatpush2.bf16.msra.mxu0 0
    %558 = vmatprep.subr.bf16.mxu0 0
    %559 = vmatpush2.bf16.msra.mxu0 0
    %560 = vmatprep.subr.bf16.mxu0 0
    %561 = vmatpush2.bf16.msra.mxu0 0
    %562 = vmatprep.subr.bf16.mxu0 0
    %563 = vmatpush2.bf16.msra.mxu0 0
    %564 = vmatprep.mubr.bf16.mxu0 0
    %565 = vmatmul.mubr.bf16.gmra.mxu0 %v530
    %v566 = vpop.f32.mrf.mxu0
    %v567 = vadd.f32 0.0, %v566
    %v568 = vpop.f32.mrf.mxu0
    %v569 = vpop.f32.mrf.mxu0
    %v570 = vpop.f32.mrf.mxu0
    %571 = vdwg.mxu0
    %v572 = vadd.f32 %v527, %v567
    %v573 = vtanh.pop %v572
    %v574 = vxor.u32 %v572, 2147483648
    %v575 = vmul.f32 %v574, 1.442695
    %v576 = vpow.pop %v575
    %v577 = vadd.f32 %v576, 1.0
    %v578 = vrcp.pop %v577
    %v579 = vmul.f32 1.0, %v578
    %581 = vrot.lane.b32.xlu0 %v579, 96
    %v582 = vpop.permute.xlu0 %581
    %v584 = vmul.f32 %v573, %v582
    %585 = vrot.lane.b32.xlu0 %v579, 64
    %v586 = vpop.permute.xlu0 %585
    %v588 = vmul.f32 %v513, %v586
    %v589 = vadd.f32 %v584, %v588
    %v590 = vtanh.pop %v589
    %591 = vrot.lane.b32.xlu0 %v579, 32
    %v592 = vpop.permute.xlu0 %591
    %v594 = vmul.f32 %v590, %v592
    %s595 = scalar_lea.vmem %s0, 14
    %v596 = vld [vmem:[%s595] sm:$0x3]
    %598 = vset.pattern.permute.xlu0 0
    %599 = vperm.xlu0 %598, %v596
    %v600 = vpop.permute.xlu0 %599
    %v602 = vmul.f32 %v600, %v49
    %v603 = vadd.f32 %v602, %v56
    %v604 = vpack.c.bf16 %v594, %v594
    %v606 = vsel %vm72, %v604, 0
    %608 = vmatprep.subr.bf16.mxu0 0
    %609 = vmatpush1.bf16.msra.mxu0 0
    %610 = vmatprep.subr.bf16.mxu0 0
    %611 = vmatpush1.bf16.msra.mxu0 0
    %612 = vmatprep.subr.bf16.mxu0 0
    %613 = vmatpush1.bf16.msra.mxu0 0
    %614 = vmatprep.subr.bf16.mxu0 0
    %615 = vmatpush1.bf16.msra.mxu0 0
    %616 = vmatprep.subr.bf16.mxu0 0
    %617 = vmatpush1.bf16.msra.mxu0 0
    %618 = vmatprep.subr.bf16.mxu0 0
    %619 = vmatpush1.bf16.msra.mxu0 0
    %620 = vmatprep.subr.bf16.mxu0 0
    %621 = vmatpush1.bf16.msra.mxu0 %v69
    %622 = vmatprep.subr.bf16.mxu0 0
    %623 = vmatpush1.bf16.msra.mxu0 %v68
    %624 = vmatprep.subr.bf16.mxu0 0
    %625 = vmatpush2.bf16.msra.mxu0 0
    %626 = vmatprep.subr.bf16.mxu0 0
    %627 = vmatpush2.bf16.msra.mxu0 0
    %628 = vmatprep.subr.bf16.mxu0 0
    %629 = vmatpush2.bf16.msra.mxu0 0
    %630 = vmatprep.subr.bf16.mxu0 0
    %631 = vmatpush2.bf16.msra.mxu0 0
    %632 = vmatprep.subr.bf16.mxu0 0
    %633 = vmatpush2.bf16.msra.mxu0 0
    %634 = vmatprep.subr.bf16.mxu0 0
    %635 = vmatpush2.bf16.msra.mxu0 0
    %636 = vmatprep.subr.bf16.mxu0 0
    %637 = vmatpush2.bf16.msra.mxu0 0
    %638 = vmatprep.subr.bf16.mxu0 0
    %639 = vmatpush2.bf16.msra.mxu0 0
    %640 = vmatprep.mubr.bf16.mxu0 0
    %641 = vmatmul.mubr.bf16.gmra.mxu0 %v606
    %v642 = vpop.f32.mrf.mxu0
    %v643 = vadd.f32 0.0, %v642
    %v644 = vpop.f32.mrf.mxu0
    %v645 = vpop.f32.mrf.mxu0
    %v646 = vpop.f32.mrf.mxu0
    %647 = vdwg.mxu0
    %v648 = vadd.f32 %v603, %v643
    %v649 = vtanh.pop %v648
    %v650 = vxor.u32 %v648, 2147483648
    %v651 = vmul.f32 %v650, 1.442695
    %v652 = vpow.pop %v651
    %v653 = vadd.f32 %v652, 1.0
    %v654 = vrcp.pop %v653
    %v655 = vmul.f32 1.0, %v654
    %657 = vrot.lane.b32.xlu0 %v655, 96
    %v658 = vpop.permute.xlu0 %657
    %v660 = vmul.f32 %v649, %v658
    %661 = vrot.lane.b32.xlu0 %v655, 64
    %v662 = vpop.permute.xlu0 %661
    %v664 = vmul.f32 %v589, %v662
    %v665 = vadd.f32 %v660, %v664
    %v666 = vtanh.pop %v665
    %667 = vrot.lane.b32.xlu0 %v655, 32
    %v668 = vpop.permute.xlu0 %667
    %v670 = vmul.f32 %v666, %v668
    %v671 = vpack.c.bf16 %v670, %v670
    %v672 = vld [vmem:[%s4] sm:$0xf]
    %v673 = vld [vmem:[%s4 + $0x4] sm:$0xf]
    %v674 = vld [vmem:[%s4 + $0x8] sm:$0xf]
    %v675 = vld [vmem:[%s4 + $0xc] sm:$0xf]
    %v676 = vld [vmem:[%s5] sm:$0x1]
    %v678 = vlaneseq
    %v679 = vshrl.u32 %v678, 7
    %v680 = vsub.s32 0, %v679
    %v681 = vrot.slane %v676, %v680
    %v687 = vunpack.c.l.b16 %v672
    %v688 = vunpack.c.l.b16 %v673
    %v689 = vunpack.c.l.b16 %v674
    %v690 = vunpack.c.l.b16 %v675
    %v691 = vpack.c.b16 %v688, %v687
    %v692 = vpack.c.b16 %v690, %v689
    %v696 = vsel %vm72, %v671, 0
    %698 = vmatprep.subr.bf16.mxu0 0
    %699 = vmatpush1.bf16.msra.mxu0 0
    %700 = vmatprep.subr.bf16.mxu0 0
    %701 = vmatpush1.bf16.msra.mxu0 0
    %702 = vmatprep.subr.bf16.mxu0 0
    %703 = vmatpush1.bf16.msra.mxu0 0
    %704 = vmatprep.subr.bf16.mxu0 0
    %705 = vmatpush1.bf16.msra.mxu0 0
    %706 = vmatprep.subr.bf16.mxu0 0
    %707 = vmatpush1.bf16.msra.mxu0 0
    %708 = vmatprep.subr.bf16.mxu0 0
    %709 = vmatpush1.bf16.msra.mxu0 0
    %710 = vmatprep.subr.bf16.mxu0 0
    %711 = vmatpush1.bf16.msra.mxu0 %v692
    %712 = vmatprep.subr.bf16.mxu0 0
    %713 = vmatpush1.bf16.msra.mxu0 %v691
    %714 = vmatprep.subr.bf16.mxu0 0
    %715 = vmatpush2.bf16.msra.mxu0 0
    %716 = vmatprep.subr.bf16.mxu0 0
    %717 = vmatpush2.bf16.msra.mxu0 0
    %718 = vmatprep.subr.bf16.mxu0 0
    %719 = vmatpush2.bf16.msra.mxu0 0
    %720 = vmatprep.subr.bf16.mxu0 0
    %721 = vmatpush2.bf16.msra.mxu0 0
    %722 = vmatprep.subr.bf16.mxu0 0
    %723 = vmatpush2.bf16.msra.mxu0 0
    %724 = vmatprep.subr.bf16.mxu0 0
    %725 = vmatpush2.bf16.msra.mxu0 0
    %726 = vmatprep.subr.bf16.mxu0 0
    %727 = vmatpush2.bf16.msra.mxu0 0
    %728 = vmatprep.subr.bf16.mxu0 0
    %729 = vmatpush2.bf16.msra.mxu0 0
    %730 = vmatprep.mubr.bf16.mxu0 0
    %731 = vmatmul.mubr.bf16.gmra.mxu0 %v696
    %v732 = vpop.f32.mrf.mxu0
    %v733 = vadd.f32 %v681, %v732
    %v734 = vpop.f32.mrf.mxu0
    %v735 = vpop.f32.mrf.mxu0
    %v736 = vpop.f32.mrf.mxu0
    %737 = vdwg.mxu0
    %vm738 = vcmask 74752
    %739 = vst.msk [vmem:[#allocation2] sm:$0x3] %vm738, %v733
    // Predicated region
    $region34: #{lstm_forward.1} parent=1 // pred_check
      _
    $region35: #{lstm_forward.1} parent=1 // pred_check_branch
      %741 = sbr.rel (0) target = $region37
    $region36: #{lstm_forward.1} parent=1 // pred_region
      %s743 = ssub.s32 32, 32
      %744 = vsyncadd [#allocation3], %s743
      %s746 = sshll.u32 [#allocation2], 4
      %s747 = int_to_ptr.vmem [resolvable:$true] %s746
      %749 = dma.vmem_to_hbm [thread:$0]  %s747, 32, %s8, [#allocation3]
    $region37: #{lstm_forward.1} parent=1 // pred_fallthru
      _
    // Predicated region
    $region38: #{lstm_forward.1} parent=1 // pred_check
      _
    $region39: #{lstm_forward.1} parent=1 // pred_check_branch
      %751 = sbr.rel (0) target = $region41
    $region40: #{lstm_forward.1} parent=1 // pred_region
      %752 = dma.done [#allocation3], 32
    $region41: #{lstm_forward.1} parent=1 // pred_fallthru
      _
    %753 = vsyncpa [#allocation3], 1

</llo_original>
